<compile_context>
chip_gen: v6e
topology: v6e:2x2x1
jax: 0.10.0
libtpu: 0.0.40
codegen_flags: <defaults>
</compile_context>

<pallas_src>
import jax
import jax.numpy as jnp
from jax import lax
from jax.experimental import pallas as pl
from jax.experimental.pallas import tpu as pltpu

# ---------------- model hyper-params (small, consistent with the module) ----------------
VOCAB_SIZE = 64
EMBED_DIM = 32            # must be divisible by NUM_HEADS
NUM_HEADS = 8
HEAD_DIM = EMBED_DIM // NUM_HEADS
NUM_CAT = 5
NUM_SUB = 7
BATCH = 2
SEQ = 8
BS = BATCH * SEQ          # 16 flattened tokens
LANES = 128               # lane-dense width used everywhere
HBS = NUM_HEADS * BS      # 128 = heads batched onto the lane axis

# ---- static row offsets of the packed constant slab (all multiples of 8) ----
OFF_W1 = 0                       # (VOCAB, 128)  pre-projected Q table (scaled, bias folded)
OFF_W2 = OFF_W1 + VOCAB_SIZE     # (VOCAB, 128)  pre-projected K|V table (bias folded)
OFF_HM = OFF_W2 + VOCAB_SIZE     # (HBS, 128)    per-head block mask for K|V
OFF_MB = OFF_HM + HBS            # (BS, 128)     additive cross-example mask (0 / -1e30)
OFF_OB = OFF_MB + BS             # (HBS, 128)    block-diagonal ones (per-head softmax sum)
OFF_PL = OFF_OB + HBS            # (8, 128)      mean-pool matrix in top-left (B, BS)
OFF_WH = OFF_PL + 8              # (128, 128)    fused out_proj+heads weight (rows E:2E)
OFF_BH = OFF_WH + HBS            # (8, 128)      fused head bias in row 0
SLAB_ROWS = OFF_BH + 8           # 544


# ---------------------------------- Pallas kernel ----------------------------------
def _attn_mlp_kernel(ids_ref,    # (HBS, 1) int32 token ids, pre-tiled x NUM_HEADS
                     slab_ref,   # (SLAB_ROWS, 128) f32 packed weights/constants
                     out_ref):   # (B, 128) fused (cat|sub) logits, zero-padded
    V, E = VOCAB_SIZE, EMBED_DIM

    # ---- one-hot token rows (already tiled x8 for the heads): one compare ----
    vocab_iota = lax.broadcasted_iota(jnp.int32, (HBS, V), 1)
    ohtile = (ids_ref[...] == vocab_iota).astype(jnp.float32)        # (128, 64)
    onehot = ohtile[0:BS, :]                                         # (16, 64) untiled copy

    # ---- embedding lookup + scaled Q projection in one MXU op (bias folded) ----
    q_pad = jnp.dot(onehot, slab_ref[OFF_W1:OFF_W1 + V, :],
                    preferred_element_type=jnp.float32)              # (16, 128), Q in cols 0:E

    # ---- embedding lookup + K|V projection, heads laid out block-diagonally ----
    kv = jnp.dot(ohtile, slab_ref[OFF_W2:OFF_W2 + V, :],
                 preferred_element_type=jnp.float32)                 # (128, 128)
    kv = kv * slab_ref[OFF_HM:OFF_HM + HBS, :]                       # keep head h's cols in rows h*BS:(h+1)*BS

    # ---- all-head attention scores, lane-dense (16, 128) ----
    s = lax.dot_general(q_pad, kv, (((1,), (1,)), ((), ())),
                        preferred_element_type=jnp.float32)          # q @ kv^T (per head)
    s = s + slab_ref[OFF_MB:OFF_MB + BS, :]                          # additive cross-example mask
    s = s - jnp.max(s, axis=-1, keepdims=True)                       # full-row max (exact per segment)
    p = jnp.exp(s)
    denom = jnp.dot(p, slab_ref[OFF_OB:OFF_OB + HBS, :],
                    preferred_element_type=jnp.float32)              # per-head sum, broadcast via MXU
    p = p * pl.reciprocal(denom, approx=True)

    # ---- attention output: V contribution lands in cols E:2E ----
    attn = jnp.dot(p, kv, preferred_element_type=jnp.float32)        # (16, 128)

    # ---- mean-pool per example via precomputed (B, BS) pooling matrix ----
    pooled = jnp.dot(slab_ref[OFF_PL:OFF_PL + BATCH, 0:BS], attn,
                     preferred_element_type=jnp.float32)             # (B, 128)

    # ---- fused out_proj + (category|sub-category) heads: one matmul, lane-dense store ----
    out_ref[...] = (jnp.dot(pooled, slab_ref[OFF_WH:OFF_WH + HBS, :],
                            preferred_element_type=jnp.float32)
                    + slab_ref[OFF_BH:OFF_BH + 1, :])


# ---------------------------------- wrapper ----------------------------------
def attention_mlp_forward(input_ids, params):
    """input_ids: (B, S) int32. Returns (category_logits (B,NUM_CAT), sub_logits (B,NUM_SUB))."""
    B, S = input_ids.shape
    E, Dh, V = EMBED_DIM, HEAD_DIM, VOCAB_SIZE
    n_out = NUM_CAT + NUM_SUB
    f32 = jnp.float32
    scale = 1.0 / (Dh ** 0.5)

    emb = params["embedding"]
    # pre-projected embedding tables: gather+linear fused; biases folded because every
    # one-hot row sums to exactly 1; 1/sqrt(Dh) folded into the Q table.
    embq = (emb @ params["wq"].T + params["bq"]) * scale             # (V, E)
    embk = emb @ params["wk"].T + params["bk"]                       # (V, E)
    embv = emb @ params["wv"].T + params["bv"]                       # (V, E)
    w1 = jnp.zeros((V, LANES), f32).at[:, :E].set(embq)
    w2 = jnp.zeros((V, LANES), f32).at[:, :E].set(embk).at[:, E:2 * E].set(embv)

    rows = jnp.arange(HBS)
    cols = jnp.arange(LANES)
    # per-head block mask: row block h keeps K cols [h*Dh,(h+1)*Dh) and V cols E+[h*Dh,(h+1)*Dh)
    head_of_row = rows[:, None] // BS
    head_of_col = (cols[None, :] % E) // Dh
    headmask = ((cols[None, :] < 2 * E) & (head_of_col == head_of_row)).astype(f32)   # (128,128)
    # additive cross-example mask (same for every head segment)
    q_ex = jnp.arange(BS)[:, None] // S
    k_ex = (cols[None, :] % BS) // S
    maskbias = jnp.where(q_ex == k_ex, 0.0, -1e30).astype(f32)                        # (16,128)
    # block-diagonal ones: per-head-segment sum + broadcast on the MXU
    onesblk = ((rows[:, None] // BS) == (cols[None, :] // BS)).astype(f32)            # (128,128)
    # mean-pool matrix
    pool = ((jnp.arange(BS)[None, :] // S) == jnp.arange(B)[:, None]).astype(f32) / S  # (B,16)
    pool_pad = jnp.zeros((8, LANES), f32).at[:B, :BS].set(pool)
    # out_proj folded into both classifier heads; weight rows E:2E pick up the V half of attn
    w_cat = params["wo"].T @ params["wc"].T                                            # (E, NUM_CAT)
    w_sub = params["wo"].T @ params["ws"].T                                            # (E, NUM_SUB)
    whead = jnp.zeros((LANES, LANES), f32).at[E:2 * E, :n_out].set(
        jnp.concatenate([w_cat, w_sub], axis=1))
    b_cat = params["bo"] @ params["wc"].T + params["bc"]
    b_sub = params["bo"] @ params["ws"].T + params["bs"]
    bhead = jnp.zeros((8, LANES), f32).at[0:1, :n_out].set(
        jnp.concatenate([b_cat, b_sub], axis=1))

    # single packed, lane-dense, 8-row-aligned constant slab
    slab = jnp.concatenate(
        [w1, w2, headmask, maskbias, onesblk, pool_pad, whead, bhead], axis=0)         # (544,128)

    # token ids, pre-tiled x NUM_HEADS (layout plumbing only)
    ids_tiled = jnp.tile(input_ids.reshape(-1).astype(jnp.int32), (NUM_HEADS,)).reshape(HBS, 1)

    out = pl.pallas_call(
        _attn_mlp_kernel,
        out_shape=jax.ShapeDtypeStruct((B, LANES), jnp.float32),
        grid=(1,),
        in_specs=[
            pl.BlockSpec((HBS, 1), lambda i: (0, 0)),          # token ids
            pl.BlockSpec((SLAB_ROWS, LANES), lambda i: (0, 0)),  # packed weights/constants
        ],
        out_specs=pl.BlockSpec((B, LANES), lambda i: (0, 0)),
        compiler_params=pltpu.CompilerParams(dimension_semantics=("arbitrary",)),
    )(ids_tiled, slab)

    return out[:, :NUM_CAT], out[:, NUM_CAT:NUM_CAT + NUM_SUB]


# ---------------------------- pure-JAX reference (for sanity) ----------------------------
def reference_forward(input_ids, params):
    x = jnp.take(params["embedding"], input_ids, axis=0)          # (B, S, E)
    q = x @ params["wq"].T + params["bq"]
    k = x @ params["wk"].T + params["bk"]
    v = x @ params["wv"].T + params["bv"]
    B, S, E = x.shape

    def split(t):  # (B, S, E) -> (B, H, S, Dh)
        return t.reshape(B, S, NUM_HEADS, HEAD_DIM).transpose(0, 2, 1, 3)

    qh, kh, vh = split(q), split(k), split(v)
    s = jnp.einsum("bhqd,bhkd->bhqk", qh, kh) / (HEAD_DIM ** 0.5)
    p = jax.nn.softmax(s, axis=-1)
    o = jnp.einsum("bhqk,bhkd->bhqd", p, vh)
    o = o.transpose(0, 2, 1, 3).reshape(B, S, E)
    attn_out = o @ params["wo"].T + params["bo"]
    pooled = jnp.mean(attn_out, axis=1)
    cat = pooled @ params["wc"].T + params["bc"]
    sub = pooled @ params["ws"].T + params["bs"]
    return cat, sub


# ---------------------------------------- main ----------------------------------------
def init_params(key):
    ks = jax.random.split(key, 10)
    return {
        "embedding": jax.random.normal(ks[0], (VOCAB_SIZE, EMBED_DIM), jnp.float32) * 0.1,
        "wq": jax.random.normal(ks[1], (EMBED_DIM, EMBED_DIM), jnp.float32) * 0.1,
        "wk": jax.random.normal(ks[2], (EMBED_DIM, EMBED_DIM), jnp.float32) * 0.1,
        "wv": jax.random.normal(ks[3], (EMBED_DIM, EMBED_DIM), jnp.float32) * 0.1,
        "bq": jax.random.normal(ks[4], (1, EMBED_DIM), jnp.float32) * 0.01,
        "bk": jax.random.normal(ks[5], (1, EMBED_DIM), jnp.float32) * 0.01,
        "bv": jax.random.normal(ks[6], (1, EMBED_DIM), jnp.float32) * 0.01,
        "wo": jax.random.normal(ks[7], (EMBED_DIM, EMBED_DIM), jnp.float32) * 0.1,
        "bo": jnp.zeros((1, EMBED_DIM), jnp.float32),
        "wc": jax.random.normal(ks[8], (NUM_CAT, EMBED_DIM), jnp.float32) * 0.1,
        "bc": jnp.zeros((1, NUM_CAT), jnp.float32),
        "ws": jax.random.normal(ks[9], (NUM_SUB, EMBED_DIM), jnp.float32) * 0.1,
        "bs": jnp.zeros((1, NUM_SUB), jnp.float32),
    }


if __name__ == "__main__":
    root = jax.random.PRNGKey(0)
    k_params, k_ids = jax.random.split(root)
    params = init_params(k_params)
    input_ids = jax.random.randint(k_ids, (BATCH, SEQ), 0, VOCAB_SIZE, dtype=jnp.int32)

    fwd = jax.jit(attention_mlp_forward)
    cat, sub = fwd(input_ids, params)
    jax.block_until_ready((cat, sub))

    ref_cat, ref_sub = reference_forward(input_ids, params)
    assert jnp.allclose(cat, ref_cat, atol=1e-3, rtol=1e-3), "category head mismatch"
    assert jnp.allclose(sub, ref_sub, atol=1e-3, rtol=1e-3), "sub-category head mismatch"

    print("KERNEL_OK")
</pallas_src>

<mosaic_0001>
module attributes {stable_mosaic.version = 11 : i64} {
  func.func @_attn_mlp_kernel(%arg0: i32, %arg1: memref<128x1xi32, #tpu.memory_space<vmem>>, %arg2: memref<544x128xf32, #tpu.memory_space<vmem>>, %arg3: memref<2x128xf32, #tpu.memory_space<vmem>>) attributes {dimension_semantics = [#tpu.dimension_semantics<arbitrary>], iteration_bounds = array<i64: 1>, scalar_prefetch = 0 : i64, scratch_operands = 0 : i64, tpu.core_type = #tpu.core_type<tc>, window_params = [{pipeline_mode = #tpu.pipeline_mode<synchronous>, transform_indices = @transform_0, window_bounds = array<i64: 128, 1>}, {pipeline_mode = #tpu.pipeline_mode<synchronous>, transform_indices = @transform_1, window_bounds = array<i64: 544, 128>}, {pipeline_mode = #tpu.pipeline_mode<synchronous>, transform_indices = @transform_2, window_bounds = array<i64: 2, 128>}]} {
    %0 = tpu.iota {dimensions = array<i32: 1>} : vector<128x64xi32>
    %c0 = arith.constant 0 : index
    %c0_0 = arith.constant 0 : index
    %1 = vector.load %arg1[%c0, %c0_0] : memref<128x1xi32, #tpu.memory_space<vmem>>, vector<128x1xi32>
    %2 = vector.broadcast %1 : vector<128x1xi32> to vector<128x64xi32>
    %3 = arith.cmpi eq, %2, %0 : vector<128x64xi32>
    %4 = arith.extui %3 : vector<128x64xi1> to vector<128x64xi32>
    %5 = arith.sitofp %4 : vector<128x64xi32> to vector<128x64xf32>
    %6 = vector.extract_strided_slice %5 {offsets = [0, 0], sizes = [16, 64], strides = [1, 1]} : vector<128x64xf32> to vector<16x64xf32>
    %c0_1 = arith.constant 0 : index
    %c0_2 = arith.constant 0 : index
    %7 = vector.load %arg2[%c0_1, %c0_2] : memref<544x128xf32, #tpu.memory_space<vmem>>, vector<64x128xf32>
    %cst = arith.constant dense<0.000000e+00> : vector<16x128xf32>
    %8 = tpu.matmul %6, %7, %cst {dimension_numbers = #tpu.dot_dimension_numbers<[1], [0], [0], [1], [0, 0, 1, 1], [], []>} : vector<16x64xf32>, vector<64x128xf32>, vector<16x128xf32> -> vector<16x128xf32>
    %c64 = arith.constant 64 : index
    %c0_3 = arith.constant 0 : index
    %9 = vector.load %arg2[%c64, %c0_3] : memref<544x128xf32, #tpu.memory_space<vmem>>, vector<64x128xf32>
    %cst_4 = arith.constant dense<0.000000e+00> : vector<128x128xf32>
    %10 = tpu.matmul %5, %9, %cst_4 {dimension_numbers = #tpu.dot_dimension_numbers<[1], [0], [0], [1], [0, 0, 1, 1], [], []>} : vector<128x64xf32>, vector<64x128xf32>, vector<128x128xf32> -> vector<128x128xf32>
    %c128 = arith.constant 128 : index
    %c0_5 = arith.constant 0 : index
    %11 = vector.load %arg2[%c128, %c0_5] : memref<544x128xf32, #tpu.memory_space<vmem>>, vector<128x128xf32>
    %12 = arith.mulf %10, %11 : vector<128x128xf32>
    %cst_6 = arith.constant dense<0.000000e+00> : vector<16x128xf32>
    %13 = tpu.matmul %8, %12, %cst_6 {dimension_numbers = #tpu.dot_dimension_numbers<[1], [1], [0], [0], [0, 0, 1, 0], [], []>} : vector<16x128xf32>, vector<128x128xf32>, vector<16x128xf32> -> vector<16x128xf32>
    %c256 = arith.constant 256 : index
    %c0_7 = arith.constant 0 : index
    %14 = vector.load %arg2[%c256, %c0_7] : memref<544x128xf32, #tpu.memory_space<vmem>>, vector<16x128xf32>
    %15 = arith.addf %13, %14 : vector<16x128xf32>
    %cst_8 = arith.constant dense<0xFF800000> : vector<16xf32>
    %16 = vector.multi_reduction <maximumf>, %15, %cst_8 [1] : vector<16x128xf32> to vector<16xf32>
    %17 = vector.shape_cast %16 : vector<16xf32> to vector<16x1xf32>
    %18 = vector.broadcast %17 : vector<16x1xf32> to vector<16x128xf32>
    %19 = arith.subf %15, %18 : vector<16x128xf32>
    %20 = math.exp %19 : vector<16x128xf32>
    %c272 = arith.constant 272 : index
    %c0_9 = arith.constant 0 : index
    %21 = vector.load %arg2[%c272, %c0_9] : memref<544x128xf32, #tpu.memory_space<vmem>>, vector<128x128xf32>
    %cst_10 = arith.constant dense<0.000000e+00> : vector<16x128xf32>
    %22 = tpu.matmul %20, %21, %cst_10 {dimension_numbers = #tpu.dot_dimension_numbers<[1], [0], [0], [1], [0, 0, 1, 1], [], []>} : vector<16x128xf32>, vector<128x128xf32>, vector<16x128xf32> -> vector<16x128xf32>
    %23 = tpu.reciprocal %22 {approx = true} : vector<16x128xf32> -> vector<16x128xf32>
    %24 = arith.mulf %20, %23 : vector<16x128xf32>
    %cst_11 = arith.constant dense<0.000000e+00> : vector<16x128xf32>
    %25 = tpu.matmul %24, %12, %cst_11 {dimension_numbers = #tpu.dot_dimension_numbers<[1], [0], [0], [1], [0, 0, 1, 1], [], []>} : vector<16x128xf32>, vector<128x128xf32>, vector<16x128xf32> -> vector<16x128xf32>
    %c400 = arith.constant 400 : index
    %c0_12 = arith.constant 0 : index
    %26 = vector.load %arg2[%c400, %c0_12] : memref<544x128xf32, #tpu.memory_space<vmem>>, vector<2x16xf32>
    %cst_13 = arith.constant dense<0.000000e+00> : vector<2x128xf32>
    %27 = tpu.matmul %26, %25, %cst_13 {dimension_numbers = #tpu.dot_dimension_numbers<[1], [0], [0], [1], [0, 0, 1, 1], [], []>} : vector<2x16xf32>, vector<16x128xf32>, vector<2x128xf32> -> vector<2x128xf32>
    %c408 = arith.constant 408 : index
    %c0_14 = arith.constant 0 : index
    %28 = vector.load %arg2[%c408, %c0_14] : memref<544x128xf32, #tpu.memory_space<vmem>>, vector<128x128xf32>
    %cst_15 = arith.constant dense<0.000000e+00> : vector<2x128xf32>
    %29 = tpu.matmul %27, %28, %cst_15 {dimension_numbers = #tpu.dot_dimension_numbers<[1], [0], [0], [1], [0, 0, 1, 1], [], []>} : vector<2x128xf32>, vector<128x128xf32>, vector<2x128xf32> -> vector<2x128xf32>
    %c536 = arith.constant 536 : index
    %c0_16 = arith.constant 0 : index
    %30 = vector.load %arg2[%c536, %c0_16] : memref<544x128xf32, #tpu.memory_space<vmem>>, vector<1x128xf32>
    %31 = vector.broadcast %30 : vector<1x128xf32> to vector<2x128xf32>
    %32 = arith.addf %29, %31 : vector<2x128xf32>
    %c0_17 = arith.constant 0 : index
    %c0_18 = arith.constant 0 : index
    %33 = vector.load %arg3[%c0_17, %c0_18] : memref<2x128xf32, #tpu.memory_space<vmem>>, vector<2x128xf32>
    tpu.vector_store %arg3[%c0_17, %c0_18], %32 {strides = array<i32>} : memref<2x128xf32, #tpu.memory_space<vmem>>, vector<2x128xf32>,
    return
  }
  func.func @transform_0(%arg0: i32) -> (i32, i32) {
    %c0_i32 = arith.constant 0 : i32
    %c0_i32_0 = arith.constant 0 : i32
    %c0_i32_1 = arith.constant 0 : i32
    return %c0_i32, %c0_i32_0 : i32, i32
  }
  func.func @transform_1(%arg0: i32) -> (i32, i32) {
    %c0_i32 = arith.constant 0 : i32
    %c0_i32_0 = arith.constant 0 : i32
    %c0_i32_1 = arith.constant 0 : i32
    return %c0_i32, %c0_i32_0 : i32, i32
  }
  func.func @transform_2(%arg0: i32) -> (i32, i32) {
    %c0_i32 = arith.constant 0 : i32
    %c0_i32_0 = arith.constant 0 : i32
    %c0_i32_1 = arith.constant 0 : i32
    return %c0_i32, %c0_i32_0 : i32, i32
  }
}

</mosaic_0001>

<llo_original>
// kernel: tile.5
$region0: #{tile.5}
  %s0 = inlined_call_operand.vmem [shape: s32[2,8], index: 0, kind: input, shape index: {}]
  %s1 = inlined_call_operand.vmem [shape: s32[16], index: 1, kind: output, shape index: {}]
  $region1: #{tile.5} parent=0
    #allocation0 [shape = 'u8[4096]{0}', space=vmem, size = 0x1000, scoped, tag = 'scoped mem for output reshape']
    #allocation1 [shape = 'u8[4096]{0}', space=vmem, size = 0x1000, scoped, tag = 'scoped mem for input reshape']
    %s3 = sshll.u32 1, 2
    %s4 = ssub.s32 %s3, 1
    %v5 = vld [vmem:[%s0] sm:%s4]
    %6 = vst [vmem:[#allocation1] sm:%s4] %v5
    %v7 = vld [vmem:[#allocation1] sm:$0x1]
    %vm8 = vcmask 64512
    %9 = vst.msk [vmem:[#allocation0] sm:$0x1] %vm8, %v7
    %s10 = scalar_lea.vmem [#allocation1], 1
    %v11 = vld [vmem:[%s10] sm:$0x1]
    %12 = vrot.lane.b32.xlu0 %v11, 8
    %v13 = vpop.permute.xlu0 %12
    %vm14 = vcmask 130112
    %15 = vst.msk [vmem:[#allocation0] sm:$0x1] %vm14, %v13
    %s17 = sshll.u32 1, 1
    %s18 = ssub.s32 %s17, 1
    %v20 = vld [vmem:[#allocation0] sm:%s18]
    %s21 = sshll.u32 1, 1
    %s22 = ssub.s32 %s21, 1
    %23 = vst [vmem:[%s1] sm:%s22] %v20

// kernel: tile.6
$region0: #{tile.6}
  #allocation0 [shape = 's32[1]{0}', space=sflag, size = 0x4, scoped, tag = 'scoped memory for tile.6']
  %s0 = inlined_call_operand.vmem [shape: s32[16], index: 0, kind: input, shape index: {}]
  %s1 = inlined_call_operand.vmem [shape: s32[8,16], index: 1, kind: output, shape index: {}]
  // Predicated region
  $region2: #{tile.6} parent=0 // pred_check
    _
  $region3: #{tile.6} parent=0 // pred_check_branch
    %3 = sbr.rel (0) target = $region5
  $region4: #{tile.6} parent=0 // pred_region
    _
  $region5: #{tile.6} parent=0 // pred_fallthru
    _
  %v4 = vld [vmem:[%s0] ss:$0 sm:$0xff]
  %5 = vst [vmem:[%s1] sm:$0xff] %v4

// kernel: tile.0
$region0: #{tile.0}
  %s0 = inlined_call_operand.vmem [shape: s32[8,16], index: 0, kind: input, shape index: {}]
  %s1 = inlined_call_operand.vmem [shape: s32[128,1], index: 1, kind: output, shape index: {}]
  %v2 = vld [vmem:[%s0] sm:$0xff]
  %vm3 = vcmask 7168
  %4 = vst.msk [vmem:[%s1] ss:$16 sm:$0x3] %vm3, %v2
  %5 = vst.msk [vmem:[%s1] ss:$16 sm:$0xc] %vm3, %v2
  %6 = vst.msk [vmem:[%s1] ss:$16 sm:$0x30] %vm3, %v2
  %7 = vst.msk [vmem:[%s1] ss:$16 sm:$0xc0] %vm3, %v2
  %v8 = vld [vmem:[%s0] sm:$0xff]
  %9 = vrot.lane.b32.xlu0 %v8, 127
  %v10 = vpop.permute.xlu0 %9
  %vm11 = vcmask 7168
  %s12 = scalar_lea.vmem %s1, 1
  %13 = vst.msk [vmem:[%s12] ss:$16 sm:$0x3] %vm11, %v10
  %s14 = scalar_lea.vmem %s1, 1
  %15 = vst.msk [vmem:[%s14] ss:$16 sm:$0xc] %vm11, %v10
  %s16 = scalar_lea.vmem %s1, 1
  %17 = vst.msk [vmem:[%s16] ss:$16 sm:$0x30] %vm11, %v10
  %s18 = scalar_lea.vmem %s1, 1
  %19 = vst.msk [vmem:[%s18] ss:$16 sm:$0xc0] %vm11, %v10
  %v20 = vld [vmem:[%s0] sm:$0xff]
  %21 = vrot.lane.b32.xlu0 %v20, 126
  %v22 = vpop.permute.xlu0 %21
  %vm23 = vcmask 7168
  %s24 = scalar_lea.vmem %s1, 2
  %25 = vst.msk [vmem:[%s24] ss:$16 sm:$0x3] %vm23, %v22
  %s26 = scalar_lea.vmem %s1, 2
  %27 = vst.msk [vmem:[%s26] ss:$16 sm:$0xc] %vm23, %v22
  %s28 = scalar_lea.vmem %s1, 2
  %29 = vst.msk [vmem:[%s28] ss:$16 sm:$0x30] %vm23, %v22
  %s30 = scalar_lea.vmem %s1, 2
  %31 = vst.msk [vmem:[%s30] ss:$16 sm:$0xc0] %vm23, %v22
  %v32 = vld [vmem:[%s0] sm:$0xff]
  %33 = vrot.lane.b32.xlu0 %v32, 125
  %v34 = vpop.permute.xlu0 %33
  %vm35 = vcmask 7168
  %s36 = scalar_lea.vmem %s1, 3
  %37 = vst.msk [vmem:[%s36] ss:$16 sm:$0x3] %vm35, %v34
  %s38 = scalar_lea.vmem %s1, 3
  %39 = vst.msk [vmem:[%s38] ss:$16 sm:$0xc] %vm35, %v34
  %s40 = scalar_lea.vmem %s1, 3
  %41 = vst.msk [vmem:[%s40] ss:$16 sm:$0x30] %vm35, %v34
  %s42 = scalar_lea.vmem %s1, 3
  %43 = vst.msk [vmem:[%s42] ss:$16 sm:$0xc0] %vm35, %v34
  %v44 = vld [vmem:[%s0] sm:$0xff]
  %45 = vrot.lane.b32.xlu0 %v44, 124
  %v46 = vpop.permute.xlu0 %45
  %vm47 = vcmask 7168
  %s48 = scalar_lea.vmem %s1, 4
  %49 = vst.msk [vmem:[%s48] ss:$16 sm:$0x3] %vm47, %v46
  %s50 = scalar_lea.vmem %s1, 4
  %51 = vst.msk [vmem:[%s50] ss:$16 sm:$0xc] %vm47, %v46
  %s52 = scalar_lea.vmem %s1, 4
  %53 = vst.msk [vmem:[%s52] ss:$16 sm:$0x30] %vm47, %v46
  %s54 = scalar_lea.vmem %s1, 4
  %55 = vst.msk [vmem:[%s54] ss:$16 sm:$0xc0] %vm47, %v46
  %v56 = vld [vmem:[%s0] sm:$0xff]
  %57 = vrot.lane.b32.xlu0 %v56, 123
  %v58 = vpop.permute.xlu0 %57
  %vm59 = vcmask 7168
  %s60 = scalar_lea.vmem %s1, 5
  %61 = vst.msk [vmem:[%s60] ss:$16 sm:$0x3] %vm59, %v58
  %s62 = scalar_lea.vmem %s1, 5
  %63 = vst.msk [vmem:[%s62] ss:$16 sm:$0xc] %vm59, %v58
  %s64 = scalar_lea.vmem %s1, 5
  %65 = vst.msk [vmem:[%s64] ss:$16 sm:$0x30] %vm59, %v58
  %s66 = scalar_lea.vmem %s1, 5
  %67 = vst.msk [vmem:[%s66] ss:$16 sm:$0xc0] %vm59, %v58
  %v68 = vld [vmem:[%s0] sm:$0xff]
  %69 = vrot.lane.b32.xlu0 %v68, 122
  %v70 = vpop.permute.xlu0 %69
  %vm71 = vcmask 7168
  %s72 = scalar_lea.vmem %s1, 6
  %73 = vst.msk [vmem:[%s72] ss:$16 sm:$0x3] %vm71, %v70
  %s74 = scalar_lea.vmem %s1, 6
  %75 = vst.msk [vmem:[%s74] ss:$16 sm:$0xc] %vm71, %v70
  %s76 = scalar_lea.vmem %s1, 6
  %77 = vst.msk [vmem:[%s76] ss:$16 sm:$0x30] %vm71, %v70
  %s78 = scalar_lea.vmem %s1, 6
  %79 = vst.msk [vmem:[%s78] ss:$16 sm:$0xc0] %vm71, %v70
  %v80 = vld [vmem:[%s0] sm:$0xff]
  %81 = vrot.lane.b32.xlu0 %v80, 121
  %v82 = vpop.permute.xlu0 %81
  %vm83 = vcmask 7168
  %s84 = scalar_lea.vmem %s1, 7
  %85 = vst.msk [vmem:[%s84] ss:$16 sm:$0x3] %vm83, %v82
  %s86 = scalar_lea.vmem %s1, 7
  %87 = vst.msk [vmem:[%s86] ss:$16 sm:$0xc] %vm83, %v82
  %s88 = scalar_lea.vmem %s1, 7
  %89 = vst.msk [vmem:[%s88] ss:$16 sm:$0x30] %vm83, %v82
  %s90 = scalar_lea.vmem %s1, 7
  %91 = vst.msk [vmem:[%s90] ss:$16 sm:$0xc0] %vm83, %v82
  %v92 = vld [vmem:[%s0] sm:$0xff]
  %93 = vrot.lane.b32.xlu0 %v92, 120
  %v94 = vpop.permute.xlu0 %93
  %vm95 = vcmask 7168
  %s96 = scalar_lea.vmem %s1, 8
  %97 = vst.msk [vmem:[%s96] ss:$16 sm:$0x3] %vm95, %v94
  %s98 = scalar_lea.vmem %s1, 8
  %99 = vst.msk [vmem:[%s98] ss:$16 sm:$0xc] %vm95, %v94
  %s100 = scalar_lea.vmem %s1, 8
  %101 = vst.msk [vmem:[%s100] ss:$16 sm:$0x30] %vm95, %v94
  %s102 = scalar_lea.vmem %s1, 8
  %103 = vst.msk [vmem:[%s102] ss:$16 sm:$0xc0] %vm95, %v94
  %v104 = vld [vmem:[%s0] sm:$0xff]
  %105 = vrot.lane.b32.xlu0 %v104, 119
  %v106 = vpop.permute.xlu0 %105
  %vm107 = vcmask 7168
  %s108 = scalar_lea.vmem %s1, 9
  %109 = vst.msk [vmem:[%s108] ss:$16 sm:$0x3] %vm107, %v106
  %s110 = scalar_lea.vmem %s1, 9
  %111 = vst.msk [vmem:[%s110] ss:$16 sm:$0xc] %vm107, %v106
  %s112 = scalar_lea.vmem %s1, 9
  %113 = vst.msk [vmem:[%s112] ss:$16 sm:$0x30] %vm107, %v106
  %s114 = scalar_lea.vmem %s1, 9
  %115 = vst.msk [vmem:[%s114] ss:$16 sm:$0xc0] %vm107, %v106
  %v116 = vld [vmem:[%s0] sm:$0xff]
  %117 = vrot.lane.b32.xlu0 %v116, 118
  %v118 = vpop.permute.xlu0 %117
  %vm119 = vcmask 7168
  %s120 = scalar_lea.vmem %s1, 10
  %121 = vst.msk [vmem:[%s120] ss:$16 sm:$0x3] %vm119, %v118
  %s122 = scalar_lea.vmem %s1, 10
  %123 = vst.msk [vmem:[%s122] ss:$16 sm:$0xc] %vm119, %v118
  %s124 = scalar_lea.vmem %s1, 10
  %125 = vst.msk [vmem:[%s124] ss:$16 sm:$0x30] %vm119, %v118
  %s126 = scalar_lea.vmem %s1, 10
  %127 = vst.msk [vmem:[%s126] ss:$16 sm:$0xc0] %vm119, %v118
  %v128 = vld [vmem:[%s0] sm:$0xff]
  %129 = vrot.lane.b32.xlu0 %v128, 117
  %v130 = vpop.permute.xlu0 %129
  %vm131 = vcmask 7168
  %s132 = scalar_lea.vmem %s1, 11
  %133 = vst.msk [vmem:[%s132] ss:$16 sm:$0x3] %vm131, %v130
  %s134 = scalar_lea.vmem %s1, 11
  %135 = vst.msk [vmem:[%s134] ss:$16 sm:$0xc] %vm131, %v130
  %s136 = scalar_lea.vmem %s1, 11
  %137 = vst.msk [vmem:[%s136] ss:$16 sm:$0x30] %vm131, %v130
  %s138 = scalar_lea.vmem %s1, 11
  %139 = vst.msk [vmem:[%s138] ss:$16 sm:$0xc0] %vm131, %v130
  %v140 = vld [vmem:[%s0] sm:$0xff]
  %141 = vrot.lane.b32.xlu0 %v140, 116
  %v142 = vpop.permute.xlu0 %141
  %vm143 = vcmask 7168
  %s144 = scalar_lea.vmem %s1, 12
  %145 = vst.msk [vmem:[%s144] ss:$16 sm:$0x3] %vm143, %v142
  %s146 = scalar_lea.vmem %s1, 12
  %147 = vst.msk [vmem:[%s146] ss:$16 sm:$0xc] %vm143, %v142
  %s148 = scalar_lea.vmem %s1, 12
  %149 = vst.msk [vmem:[%s148] ss:$16 sm:$0x30] %vm143, %v142
  %s150 = scalar_lea.vmem %s1, 12
  %151 = vst.msk [vmem:[%s150] ss:$16 sm:$0xc0] %vm143, %v142
  %v152 = vld [vmem:[%s0] sm:$0xff]
  %153 = vrot.lane.b32.xlu0 %v152, 115
  %v154 = vpop.permute.xlu0 %153
  %vm155 = vcmask 7168
  %s156 = scalar_lea.vmem %s1, 13
  %157 = vst.msk [vmem:[%s156] ss:$16 sm:$0x3] %vm155, %v154
  %s158 = scalar_lea.vmem %s1, 13
  %159 = vst.msk [vmem:[%s158] ss:$16 sm:$0xc] %vm155, %v154
  %s160 = scalar_lea.vmem %s1, 13
  %161 = vst.msk [vmem:[%s160] ss:$16 sm:$0x30] %vm155, %v154
  %s162 = scalar_lea.vmem %s1, 13
  %163 = vst.msk [vmem:[%s162] ss:$16 sm:$0xc0] %vm155, %v154
  %v164 = vld [vmem:[%s0] sm:$0xff]
  %165 = vrot.lane.b32.xlu0 %v164, 114
  %v166 = vpop.permute.xlu0 %165
  %vm167 = vcmask 7168
  %s168 = scalar_lea.vmem %s1, 14
  %169 = vst.msk [vmem:[%s168] ss:$16 sm:$0x3] %vm167, %v166
  %s170 = scalar_lea.vmem %s1, 14
  %171 = vst.msk [vmem:[%s170] ss:$16 sm:$0xc] %vm167, %v166
  %s172 = scalar_lea.vmem %s1, 14
  %173 = vst.msk [vmem:[%s172] ss:$16 sm:$0x30] %vm167, %v166
  %s174 = scalar_lea.vmem %s1, 14
  %175 = vst.msk [vmem:[%s174] ss:$16 sm:$0xc0] %vm167, %v166
  %v176 = vld [vmem:[%s0] sm:$0xff]
  %177 = vrot.lane.b32.xlu0 %v176, 113
  %v178 = vpop.permute.xlu0 %177
  %vm179 = vcmask 7168
  %s180 = scalar_lea.vmem %s1, 15
  %181 = vst.msk [vmem:[%s180] ss:$16 sm:$0x3] %vm179, %v178
  %s182 = scalar_lea.vmem %s1, 15
  %183 = vst.msk [vmem:[%s182] ss:$16 sm:$0xc] %vm179, %v178
  %s184 = scalar_lea.vmem %s1, 15
  %185 = vst.msk [vmem:[%s184] ss:$16 sm:$0x30] %vm179, %v178
  %s186 = scalar_lea.vmem %s1, 15
  %187 = vst.msk [vmem:[%s186] ss:$16 sm:$0xc0] %vm179, %v178

// kernel: attention_mlp_forward.1
$region0: #{attention_mlp_forward.1}
  #allocation0 [shape = 'u32[]', space=smem, size = 0x4, offset = 0x4, fixed_abs, tag = 'smem constant byte address 0x4 - core index']
  #allocation1 [shape = 'u32[144,128]{1,0:T(1,128)}', space=vmem, size = 0x12000, scoped, tag = 'internal scratch']
  %s0 = inlined_call_operand.vmem [shape: s32[128,1], index: 0, kind: input, shape index: {}]
  %s1 = inlined_call_operand.vmem [shape: f32[544,128], index: 1, kind: input, shape index: {}]
  %s2 = inlined_call_operand.vmem [shape: f32[2,128], index: 2, kind: output, shape index: {}]
  %s3 = sld [smem:[#allocation0]]
  $region18: #{attention_mlp_forward.1} parent=0
    _
  %s5 = ssub.s32 1, %s3
  %s6 = scalar_select 0, %s5, %s3
  // Predicated region
  $region2: #{attention_mlp_forward.1} parent=0 // pred_check
    _
  $region3: #{attention_mlp_forward.1} parent=0 // pred_check_branch
    %8 = sbr.rel (0) target = $region5
  $region4: #{attention_mlp_forward.1} parent=0 // pred_region
    _
  $region5: #{attention_mlp_forward.1} parent=0 // pred_fallthru
    _
  // Predicated region
  $region6: #{attention_mlp_forward.1} parent=0 // pred_check
    _
  $region7: #{attention_mlp_forward.1} parent=0 // pred_check_branch
    %10 = sbr.rel (0) target = $region9
  $region8: #{attention_mlp_forward.1} parent=0 // pred_region
    _
  $region9: #{attention_mlp_forward.1} parent=0 // pred_fallthru
    _
  %v11 = vlaneseq
  %v12 = vand.u32 %v11, 127
  %v13 = vld [vmem:[%s0] sm:$0xff]
  %v14 = vld [vmem:[%s0 + $0x8] sm:$0xff]
  %v15 = vld [vmem:[%s0 + $0x10] sm:$0xff]
  %v16 = vld [vmem:[%s0 + $0x18] sm:$0xff]
  %v17 = vld [vmem:[%s0 + $0x20] sm:$0xff]
  %v18 = vld [vmem:[%s0 + $0x28] sm:$0xff]
  %v19 = vld [vmem:[%s0 + $0x30] sm:$0xff]
  %v20 = vld [vmem:[%s0 + $0x38] sm:$0xff]
  %v21 = vld [vmem:[%s0 + $0x40] sm:$0xff]
  %v22 = vld [vmem:[%s0 + $0x48] sm:$0xff]
  %v23 = vld [vmem:[%s0 + $0x50] sm:$0xff]
  %v24 = vld [vmem:[%s0 + $0x58] sm:$0xff]
  %v25 = vld [vmem:[%s0 + $0x60] sm:$0xff]
  %v26 = vld [vmem:[%s0 + $0x68] sm:$0xff]
  %v27 = vld [vmem:[%s0 + $0x70] sm:$0xff]
  %v28 = vld [vmem:[%s0 + $0x78] sm:$0xff]
  %29 = vset.pattern.permute.xlu0 0
  %30 = vperm.xlu0 %29, %v13
  %v31 = vpop.permute.xlu0 %30
  %32 = vset.pattern.permute.xlu0 0
  %33 = vperm.xlu0 %32, %v14
  %v34 = vpop.permute.xlu0 %33
  %35 = vset.pattern.permute.xlu0 0
  %36 = vperm.xlu0 %35, %v15
  %v37 = vpop.permute.xlu0 %36
  %38 = vset.pattern.permute.xlu0 0
  %39 = vperm.xlu0 %38, %v16
  %v40 = vpop.permute.xlu0 %39
  %41 = vset.pattern.permute.xlu0 0
  %42 = vperm.xlu0 %41, %v17
  %v43 = vpop.permute.xlu0 %42
  %44 = vset.pattern.permute.xlu0 0
  %45 = vperm.xlu0 %44, %v18
  %v46 = vpop.permute.xlu0 %45
  %47 = vset.pattern.permute.xlu0 0
  %48 = vperm.xlu0 %47, %v19
  %v49 = vpop.permute.xlu0 %48
  %50 = vset.pattern.permute.xlu0 0
  %51 = vperm.xlu0 %50, %v20
  %v52 = vpop.permute.xlu0 %51
  %53 = vset.pattern.permute.xlu0 0
  %54 = vperm.xlu0 %53, %v21
  %v55 = vpop.permute.xlu0 %54
  %56 = vset.pattern.permute.xlu0 0
  %57 = vperm.xlu0 %56, %v22
  %v58 = vpop.permute.xlu0 %57
  %59 = vset.pattern.permute.xlu0 0
  %60 = vperm.xlu0 %59, %v23
  %v61 = vpop.permute.xlu0 %60
  %62 = vset.pattern.permute.xlu0 0
  %63 = vperm.xlu0 %62, %v24
  %v64 = vpop.permute.xlu0 %63
  %65 = vset.pattern.permute.xlu0 0
  %66 = vperm.xlu0 %65, %v25
  %v67 = vpop.permute.xlu0 %66
  %68 = vset.pattern.permute.xlu0 0
  %69 = vperm.xlu0 %68, %v26
  %v70 = vpop.permute.xlu0 %69
  %71 = vset.pattern.permute.xlu0 0
  %72 = vperm.xlu0 %71, %v27
  %v73 = vpop.permute.xlu0 %72
  %74 = vset.pattern.permute.xlu0 0
  %75 = vperm.xlu0 %74, %v28
  %v76 = vpop.permute.xlu0 %75
  %vm77 = vcmp.eq.s32.totalorder %v31, %v12
  %vm78 = vcmp.eq.s32.totalorder %v34, %v12
  %vm79 = vcmp.eq.s32.totalorder %v37, %v12
  %vm80 = vcmp.eq.s32.totalorder %v40, %v12
  %vm81 = vcmp.eq.s32.totalorder %v43, %v12
  %vm82 = vcmp.eq.s32.totalorder %v46, %v12
  %vm83 = vcmp.eq.s32.totalorder %v49, %v12
  %vm84 = vcmp.eq.s32.totalorder %v52, %v12
  %vm85 = vcmp.eq.s32.totalorder %v55, %v12
  %vm86 = vcmp.eq.s32.totalorder %v58, %v12
  %vm87 = vcmp.eq.s32.totalorder %v61, %v12
  %vm88 = vcmp.eq.s32.totalorder %v64, %v12
  %vm89 = vcmp.eq.s32.totalorder %v67, %v12
  %vm90 = vcmp.eq.s32.totalorder %v70, %v12
  %vm91 = vcmp.eq.s32.totalorder %v73, %v12
  %vm92 = vcmp.eq.s32.totalorder %v76, %v12
  %v93 = vsel %vm77, 1, 0
  %v94 = vsel %vm78, 1, 0
  %v95 = vsel %vm79, 1, 0
  %v96 = vsel %vm80, 1, 0
  %v97 = vsel %vm81, 1, 0
  %v98 = vsel %vm82, 1, 0
  %v99 = vsel %vm83, 1, 0
  %v100 = vsel %vm84, 1, 0
  %v101 = vsel %vm85, 1, 0
  %v102 = vsel %vm86, 1, 0
  %v103 = vsel %vm87, 1, 0
  %v104 = vsel %vm88, 1, 0
  %v105 = vsel %vm89, 1, 0
  %v106 = vsel %vm90, 1, 0
  %v107 = vsel %vm91, 1, 0
  %v108 = vsel %vm92, 1, 0
  %v109 = vcvt.s32.f32 %v93
  %v110 = vcvt.s32.f32 %v94
  %v111 = vcvt.s32.f32 %v95
  %v112 = vcvt.s32.f32 %v96
  %v113 = vcvt.s32.f32 %v97
  %v114 = vcvt.s32.f32 %v98
  %v115 = vcvt.s32.f32 %v99
  %v116 = vcvt.s32.f32 %v100
  %v117 = vcvt.s32.f32 %v101
  %v118 = vcvt.s32.f32 %v102
  %v119 = vcvt.s32.f32 %v103
  %v120 = vcvt.s32.f32 %v104
  %v121 = vcvt.s32.f32 %v105
  %v122 = vcvt.s32.f32 %v106
  %v123 = vcvt.s32.f32 %v107
  %v124 = vcvt.s32.f32 %v108
  %v125 = vld [vmem:[%s1] sm:$0xff]
  %v126 = vld [vmem:[%s1 + $0x8] sm:$0xff]
  %v127 = vld [vmem:[%s1 + $0x10] sm:$0xff]
  %v128 = vld [vmem:[%s1 + $0x18] sm:$0xff]
  %v129 = vld [vmem:[%s1 + $0x20] sm:$0xff]
  %v130 = vld [vmem:[%s1 + $0x28] sm:$0xff]
  %v131 = vld [vmem:[%s1 + $0x30] sm:$0xff]
  %v132 = vld [vmem:[%s1 + $0x38] sm:$0xff]
  %vm133 = vcmask 523264
  %v135 = vsel %vm133, %v109, 0
  %v138 = vsel %vm133, %v110, 0
  %140 = vmatprep.subr.mxu0 0.0
  %141 = vmatpush1.msra.mxu0 0.0
  %142 = vmatprep.subr.mxu0 0.0
  %143 = vmatpush1.msra.mxu0 0.0
  %144 = vmatprep.subr.mxu0 0.0
  %145 = vmatpush1.msra.mxu0 0.0
  %146 = vmatprep.subr.mxu0 0.0
  %147 = vmatpush1.msra.mxu0 0.0
  %148 = vmatprep.subr.mxu0 0.0
  %149 = vmatpush1.msra.mxu0 0.0
  %150 = vmatprep.subr.mxu0 0.0
  %151 = vmatpush1.msra.mxu0 0.0
  %152 = vmatprep.subr.mxu0 0.0
  %153 = vmatpush1.msra.mxu0 0.0
  %154 = vmatprep.subr.mxu0 0.0
  %155 = vmatpush1.msra.mxu0 0.0
  %156 = vmatprep.subr.mxu0 0.0
  %157 = vmatpush1.msra.mxu0 %v132
  %158 = vmatprep.subr.mxu0 0.0
  %159 = vmatpush1.msra.mxu0 %v131
  %160 = vmatprep.subr.mxu0 0.0
  %161 = vmatpush1.msra.mxu0 %v130
  %162 = vmatprep.subr.mxu0 0.0
  %163 = vmatpush1.msra.mxu0 %v129
  %164 = vmatprep.subr.mxu0 0.0
  %165 = vmatpush1.msra.mxu0 %v128
  %166 = vmatprep.subr.mxu0 0.0
  %167 = vmatpush1.msra.mxu0 %v127
  %168 = vmatprep.subr.mxu0 0.0
  %169 = vmatpush1.msra.mxu0 %v126
  %170 = vmatprep.subr.mxu0 0.0
  %171 = vmatpush1.msra.mxu0 %v125
  %172 = vmatprep.subr.mxu0 0.0
  %173 = vmatpush2.msra.mxu0 0.0
  %174 = vmatprep.subr.mxu0 0.0
  %175 = vmatpush2.msra.mxu0 0.0
  %176 = vmatprep.subr.mxu0 0.0
  %177 = vmatpush2.msra.mxu0 0.0
  %178 = vmatprep.subr.mxu0 0.0
  %179 = vmatpush2.msra.mxu0 0.0
  %180 = vmatprep.subr.mxu0 0.0
  %181 = vmatpush2.msra.mxu0 0.0
  %182 = vmatprep.subr.mxu0 0.0
  %183 = vmatpush2.msra.mxu0 0.0
  %184 = vmatprep.subr.mxu0 0.0
  %185 = vmatpush2.msra.mxu0 0.0
  %186 = vmatprep.subr.mxu0 0.0
  %187 = vmatpush2.msra.mxu0 0.0
  %188 = vmatprep.subr.mxu0 0.0
  %189 = vmatpush2.msra.mxu0 0.0
  %190 = vmatprep.subr.mxu0 0.0
  %191 = vmatpush2.msra.mxu0 0.0
  %192 = vmatprep.subr.mxu0 0.0
  %193 = vmatpush2.msra.mxu0 0.0
  %194 = vmatprep.subr.mxu0 0.0
  %195 = vmatpush2.msra.mxu0 0.0
  %196 = vmatprep.subr.mxu0 0.0
  %197 = vmatpush2.msra.mxu0 0.0
  %198 = vmatprep.subr.mxu0 0.0
  %199 = vmatpush2.msra.mxu0 0.0
  %200 = vmatprep.subr.mxu0 0.0
  %201 = vmatpush2.msra.mxu0 0.0
  %202 = vmatprep.subr.mxu0 0.0
  %203 = vmatpush2.msra.mxu0 0.0
  %204 = vmatprep.mubr.f32.mxu0 0.0
  %205 = vmatmul.mubr.f32.gmra.mxu0 %v135
  %v206 = vpop.f32.mrf.mxu0
  %v207 = vadd.f32 0.0, %v206
  %v208 = vpop.f32.mrf.mxu0
  %209 = vmatprep.mubr.f32.mxu0 0.0
  %210 = vmatmul.mubr.f32.gmra.mxu0 %v138
  %v211 = vpop.f32.mrf.mxu0
  %v212 = vadd.f32 0.0, %v211
  %v213 = vpop.f32.mrf.mxu0
  %214 = vdwg.mxu0
  %v215 = vld [vmem:[%s1 + $0x40] sm:$0xff]
  %v216 = vld [vmem:[%s1 + $0x48] sm:$0xff]
  %v217 = vld [vmem:[%s1 + $0x50] sm:$0xff]
  %v218 = vld [vmem:[%s1 + $0x58] sm:$0xff]
  %v219 = vld [vmem:[%s1 + $0x60] sm:$0xff]
  %v220 = vld [vmem:[%s1 + $0x68] sm:$0xff]
  %v221 = vld [vmem:[%s1 + $0x70] sm:$0xff]
  %v222 = vld [vmem:[%s1 + $0x78] sm:$0xff]
  %v224 = vsel %vm133, %v111, 0
  %v227 = vsel %vm133, %v112, 0
  %v230 = vsel %vm133, %v113, 0
  %v233 = vsel %vm133, %v114, 0
  %v236 = vsel %vm133, %v115, 0
  %v239 = vsel %vm133, %v116, 0
  %v242 = vsel %vm133, %v117, 0
  %v245 = vsel %vm133, %v118, 0
  %v248 = vsel %vm133, %v119, 0
  %v251 = vsel %vm133, %v120, 0
  %v254 = vsel %vm133, %v121, 0
  %v257 = vsel %vm133, %v122, 0
  %v260 = vsel %vm133, %v123, 0
  %v263 = vsel %vm133, %v124, 0
  %265 = vmatprep.subr.mxu0 0.0
  %266 = vmatpush1.msra.mxu0 0.0
  %267 = vmatprep.subr.mxu0 0.0
  %268 = vmatpush1.msra.mxu0 0.0
  %269 = vmatprep.subr.mxu0 0.0
  %270 = vmatpush1.msra.mxu0 0.0
  %271 = vmatprep.subr.mxu0 0.0
  %272 = vmatpush1.msra.mxu0 0.0
  %273 = vmatprep.subr.mxu0 0.0
  %274 = vmatpush1.msra.mxu0 0.0
  %275 = vmatprep.subr.mxu0 0.0
  %276 = vmatpush1.msra.mxu0 0.0
  %277 = vmatprep.subr.mxu0 0.0
  %278 = vmatpush1.msra.mxu0 0.0
  %279 = vmatprep.subr.mxu0 0.0
  %280 = vmatpush1.msra.mxu0 0.0
  %281 = vmatprep.subr.mxu0 0.0
  %282 = vmatpush1.msra.mxu0 %v222
  %283 = vmatprep.subr.mxu0 0.0
  %284 = vmatpush1.msra.mxu0 %v221
  %285 = vmatprep.subr.mxu0 0.0
  %286 = vmatpush1.msra.mxu0 %v220
  %287 = vmatprep.subr.mxu0 0.0
  %288 = vmatpush1.msra.mxu0 %v219
  %289 = vmatprep.subr.mxu0 0.0
  %290 = vmatpush1.msra.mxu0 %v218
  %291 = vmatprep.subr.mxu0 0.0
  %292 = vmatpush1.msra.mxu0 %v217
  %293 = vmatprep.subr.mxu0 0.0
  %294 = vmatpush1.msra.mxu0 %v216
  %295 = vmatprep.subr.mxu0 0.0
  %296 = vmatpush1.msra.mxu0 %v215
  %297 = vmatprep.subr.mxu0 0.0
  %298 = vmatpush2.msra.mxu0 0.0
  %299 = vmatprep.subr.mxu0 0.0
  %300 = vmatpush2.msra.mxu0 0.0
  %301 = vmatprep.subr.mxu0 0.0
  %302 = vmatpush2.msra.mxu0 0.0
  %303 = vmatprep.subr.mxu0 0.0
  %304 = vmatpush2.msra.mxu0 0.0
  %305 = vmatprep.subr.mxu0 0.0
  %306 = vmatpush2.msra.mxu0 0.0
  %307 = vmatprep.subr.mxu0 0.0
  %308 = vmatpush2.msra.mxu0 0.0
  %309 = vmatprep.subr.mxu0 0.0
  %310 = vmatpush2.msra.mxu0 0.0
  %311 = vmatprep.subr.mxu0 0.0
  %312 = vmatpush2.msra.mxu0 0.0
  %313 = vmatprep.subr.mxu0 0.0
  %314 = vmatpush2.msra.mxu0 0.0
  %315 = vmatprep.subr.mxu0 0.0
  %316 = vmatpush2.msra.mxu0 0.0
  %317 = vmatprep.subr.mxu0 0.0
  %318 = vmatpush2.msra.mxu0 0.0
  %319 = vmatprep.subr.mxu0 0.0
  %320 = vmatpush2.msra.mxu0 0.0
  %321 = vmatprep.subr.mxu0 0.0
  %322 = vmatpush2.msra.mxu0 0.0
  %323 = vmatprep.subr.mxu0 0.0
  %324 = vmatpush2.msra.mxu0 0.0
  %325 = vmatprep.subr.mxu0 0.0
  %326 = vmatpush2.msra.mxu0 0.0
  %327 = vmatprep.subr.mxu0 0.0
  %328 = vmatpush2.msra.mxu0 0.0
  %329 = vmatprep.mubr.f32.mxu0 0.0
  %330 = vmatmul.mubr.f32.gmra.mxu0 %v135
  %v331 = vpop.f32.mrf.mxu0
  %v332 = vadd.f32 0.0, %v331
  %v333 = vpop.f32.mrf.mxu0
  %334 = vmatprep.mubr.f32.mxu0 0.0
  %335 = vmatmul.mubr.f32.gmra.mxu0 %v138
  %v336 = vpop.f32.mrf.mxu0
  %v337 = vadd.f32 0.0, %v336
  %v338 = vpop.f32.mrf.mxu0
  %339 = vmatprep.mubr.f32.mxu0 0.0
  %340 = vmatmul.mubr.f32.gmra.mxu0 %v224
  %v341 = vpop.f32.mrf.mxu0
  %v342 = vadd.f32 0.0, %v341
  %v343 = vpop.f32.mrf.mxu0
  %344 = vmatprep.mubr.f32.mxu0 0.0
  %345 = vmatmul.mubr.f32.gmra.mxu0 %v227
  %v346 = vpop.f32.mrf.mxu0
  %v347 = vadd.f32 0.0, %v346
  %v348 = vpop.f32.mrf.mxu0
  %349 = vmatprep.mubr.f32.mxu0 0.0
  %350 = vmatmul.mubr.f32.gmra.mxu0 %v230
  %v351 = vpop.f32.mrf.mxu0
  %v352 = vadd.f32 0.0, %v351
  %v353 = vpop.f32.mrf.mxu0
  %354 = vmatprep.mubr.f32.mxu0 0.0
  %355 = vmatmul.mubr.f32.gmra.mxu0 %v233
  %v356 = vpop.f32.mrf.mxu0
  %v357 = vadd.f32 0.0, %v356
  %v358 = vpop.f32.mrf.mxu0
  %359 = vmatprep.mubr.f32.mxu0 0.0
  %360 = vmatmul.mubr.f32.gmra.mxu0 %v236
  %v361 = vpop.f32.mrf.mxu0
  %v362 = vadd.f32 0.0, %v361
  %v363 = vpop.f32.mrf.mxu0
  %364 = vmatprep.mubr.f32.mxu0 0.0
  %365 = vmatmul.mubr.f32.gmra.mxu0 %v239
  %v366 = vpop.f32.mrf.mxu0
  %v367 = vadd.f32 0.0, %v366
  %v368 = vpop.f32.mrf.mxu0
  %369 = vmatprep.mubr.f32.mxu0 0.0
  %370 = vmatmul.mubr.f32.gmra.mxu0 %v242
  %v371 = vpop.f32.mrf.mxu0
  %v372 = vadd.f32 0.0, %v371
  %v373 = vpop.f32.mrf.mxu0
  %374 = vmatprep.mubr.f32.mxu0 0.0
  %375 = vmatmul.mubr.f32.gmra.mxu0 %v245
  %v376 = vpop.f32.mrf.mxu0
  %v377 = vadd.f32 0.0, %v376
  %v378 = vpop.f32.mrf.mxu0
  %379 = vmatprep.mubr.f32.mxu0 0.0
  %380 = vmatmul.mubr.f32.gmra.mxu0 %v248
  %v381 = vpop.f32.mrf.mxu0
  %v382 = vadd.f32 0.0, %v381
  %v383 = vpop.f32.mrf.mxu0
  %384 = vmatprep.mubr.f32.mxu0 0.0
  %385 = vmatmul.mubr.f32.gmra.mxu0 %v251
  %v386 = vpop.f32.mrf.mxu0
  %v387 = vadd.f32 0.0, %v386
  %v388 = vpop.f32.mrf.mxu0
  %389 = vmatprep.mubr.f32.mxu0 0.0
  %390 = vmatmul.mubr.f32.gmra.mxu0 %v254
  %v391 = vpop.f32.mrf.mxu0
  %v392 = vadd.f32 0.0, %v391
  %v393 = vpop.f32.mrf.mxu0
  %394 = vmatprep.mubr.f32.mxu0 0.0
  %395 = vmatmul.mubr.f32.gmra.mxu0 %v257
  %v396 = vpop.f32.mrf.mxu0
  %v397 = vadd.f32 0.0, %v396
  %v398 = vpop.f32.mrf.mxu0
  %399 = vmatprep.mubr.f32.mxu0 0.0
  %400 = vmatmul.mubr.f32.gmra.mxu0 %v260
  %v401 = vpop.f32.mrf.mxu0
  %v402 = vadd.f32 0.0, %v401
  %v403 = vpop.f32.mrf.mxu0
  %404 = vmatprep.mubr.f32.mxu0 0.0
  %405 = vmatmul.mubr.f32.gmra.mxu0 %v263
  %v406 = vpop.f32.mrf.mxu0
  %v407 = vadd.f32 0.0, %v406
  %v408 = vpop.f32.mrf.mxu0
  %409 = vdwg.mxu0
  %v410 = vld [vmem:[%s1 + $0x80] sm:$0xff]
  %v411 = vld [vmem:[%s1 + $0x88] sm:$0xff]
  %v412 = vld [vmem:[%s1 + $0x90] sm:$0xff]
  %v413 = vld [vmem:[%s1 + $0x98] sm:$0xff]
  %v414 = vld [vmem:[%s1 + $0xa0] sm:$0xff]
  %v415 = vld [vmem:[%s1 + $0xa8] sm:$0xff]
  %v416 = vld [vmem:[%s1 + $0xb0] sm:$0xff]
  %v417 = vld [vmem:[%s1 + $0xb8] sm:$0xff]
  %v418 = vld [vmem:[%s1 + $0xc0] sm:$0xff]
  %v419 = vld [vmem:[%s1 + $0xc8] sm:$0xff]
  %v420 = vld [vmem:[%s1 + $0xd0] sm:$0xff]
  %v421 = vld [vmem:[%s1 + $0xd8] sm:$0xff]
  %v422 = vld [vmem:[%s1 + $0xe0] sm:$0xff]
  %v423 = vld [vmem:[%s1 + $0xe8] sm:$0xff]
  %v424 = vld [vmem:[%s1 + $0xf0] sm:$0xff]
  %v425 = vld [vmem:[%s1 + $0xf8] sm:$0xff]
  %v426 = vmul.f32 %v332, %v410
  %v427 = vmul.f32 %v337, %v411
  %v428 = vmul.f32 %v342, %v412
  %v429 = vmul.f32 %v347, %v413
  %v430 = vmul.f32 %v352, %v414
  %v431 = vmul.f32 %v357, %v415
  %v432 = vmul.f32 %v362, %v416
  %v433 = vmul.f32 %v367, %v417
  %v434 = vmul.f32 %v372, %v418
  %v435 = vmul.f32 %v377, %v419
  %v436 = vmul.f32 %v382, %v420
  %v437 = vmul.f32 %v387, %v421
  %v438 = vmul.f32 %v392, %v422
  %v439 = vmul.f32 %v397, %v423
  %v440 = vmul.f32 %v402, %v424
  %v441 = vmul.f32 %v407, %v425
  %v442 = vld [vmem:[%s1 + $0x100] sm:$0xff]
  %v443 = vld [vmem:[%s1 + $0x108] sm:$0xff]
  %444 = vmatprep.subr.mxu0 0.0
  %445 = vmatpush1.xpose.msra.mxu0 %v441
  %446 = vmatprep.subr.mxu0 0.0
  %447 = vmatpush1.xpose.msra.mxu0 %v440
  %448 = vmatprep.subr.mxu0 0.0
  %449 = vmatpush1.xpose.msra.mxu0 %v439
  %450 = vmatprep.subr.mxu0 0.0
  %451 = vmatpush1.xpose.msra.mxu0 %v438
  %452 = vmatprep.subr.mxu0 0.0
  %453 = vmatpush1.xpose.msra.mxu0 %v437
  %454 = vmatprep.subr.mxu0 0.0
  %455 = vmatpush1.xpose.msra.mxu0 %v436
  %456 = vmatprep.subr.mxu0 0.0
  %457 = vmatpush1.xpose.msra.mxu0 %v435
  %458 = vmatprep.subr.mxu0 0.0
  %459 = vmatpush1.xpose.msra.mxu0 %v434
  %460 = vmatprep.subr.mxu0 0.0
  %461 = vmatpush1.xpose.msra.mxu0 %v433
  %462 = vmatprep.subr.mxu0 0.0
  %463 = vmatpush1.xpose.msra.mxu0 %v432
  %464 = vmatprep.subr.mxu0 0.0
  %465 = vmatpush1.xpose.msra.mxu0 %v431
  %466 = vmatprep.subr.mxu0 0.0
  %467 = vmatpush1.xpose.msra.mxu0 %v430
  %468 = vmatprep.subr.mxu0 0.0
  %469 = vmatpush1.xpose.msra.mxu0 %v429
  %470 = vmatprep.subr.mxu0 0.0
  %471 = vmatpush1.xpose.msra.mxu0 %v428
  %472 = vmatprep.subr.mxu0 0.0
  %473 = vmatpush1.xpose.msra.mxu0 %v427
  %474 = vmatprep.subr.mxu0 0.0
  %475 = vmatpush1.xpose.msra.mxu0 %v426
  %476 = vmatprep.subr.mxu0 0.0
  %477 = vmatpush2.xpose.msra.mxu0 0.0
  %478 = vmatprep.subr.mxu0 0.0
  %479 = vmatpush2.xpose.msra.mxu0 0.0
  %480 = vmatprep.subr.mxu0 0.0
  %481 = vmatpush2.xpose.msra.mxu0 0.0
  %482 = vmatprep.subr.mxu0 0.0
  %483 = vmatpush2.xpose.msra.mxu0 0.0
  %484 = vmatprep.subr.mxu0 0.0
  %485 = vmatpush2.xpose.msra.mxu0 0.0
  %486 = vmatprep.subr.mxu0 0.0
  %487 = vmatpush2.xpose.msra.mxu0 0.0
  %488 = vmatprep.subr.mxu0 0.0
  %489 = vmatpush2.xpose.msra.mxu0 0.0
  %490 = vmatprep.subr.mxu0 0.0
  %491 = vmatpush2.xpose.msra.mxu0 0.0
  %492 = vmatprep.subr.mxu0 0.0
  %493 = vmatpush2.xpose.msra.mxu0 0.0
  %494 = vmatprep.subr.mxu0 0.0
  %495 = vmatpush2.xpose.msra.mxu0 0.0
  %496 = vmatprep.subr.mxu0 0.0
  %497 = vmatpush2.xpose.msra.mxu0 0.0
  %498 = vmatprep.subr.mxu0 0.0
  %499 = vmatpush2.xpose.msra.mxu0 0.0
  %500 = vmatprep.subr.mxu0 0.0
  %501 = vmatpush2.xpose.msra.mxu0 0.0
  %502 = vmatprep.subr.mxu0 0.0
  %503 = vmatpush2.xpose.msra.mxu0 0.0
  %504 = vmatprep.subr.mxu0 0.0
  %505 = vmatpush2.xpose.msra.mxu0 0.0
  %506 = vmatprep.subr.mxu0 0.0
  %507 = vmatpush2.xpose.msra.mxu0 0.0
  %508 = vmatprep.mubr.f32.mxu0 0.0
  %509 = vmatmul.mubr.f32.gmra.mxu0 %v207
  %v510 = vpop.f32.mrf.mxu0
  %v511 = vadd.f32 %v442, %v510
  %v512 = vpop.f32.mrf.mxu0
  %513 = vmatprep.mubr.f32.mxu0 0.0
  %514 = vmatmul.mubr.f32.gmra.mxu0 %v212
  %v515 = vpop.f32.mrf.mxu0
  %v516 = vadd.f32 %v443, %v515
  %v517 = vpop.f32.mrf.mxu0
  %518 = vdwg.mxu0
  %519 = vmax.xlane.f32.xlu0 %v511
  %v520 = vpop.xlane.xlu0 %519
  %521 = vmax.xlane.f32.xlu0 %v516
  %v522 = vpop.xlane.xlu0 %521
  %v523 = vsub.f32 %v511, %v520
  %v524 = vsub.f32 %v516, %v522
  %v525 = vmul.f32 %v523, 1.442695
  %v526 = vpow.pop %v525
  %v527 = vmul.f32 %v524, 1.442695
  %v528 = vpow.pop %v527
  %v529 = vld [vmem:[%s1 + $0x110] sm:$0xff]
  %v530 = vld [vmem:[%s1 + $0x118] sm:$0xff]
  %v531 = vld [vmem:[%s1 + $0x120] sm:$0xff]
  %v532 = vld [vmem:[%s1 + $0x128] sm:$0xff]
  %v533 = vld [vmem:[%s1 + $0x130] sm:$0xff]
  %v534 = vld [vmem:[%s1 + $0x138] sm:$0xff]
  %v535 = vld [vmem:[%s1 + $0x140] sm:$0xff]
  %v536 = vld [vmem:[%s1 + $0x148] sm:$0xff]
  %v537 = vld [vmem:[%s1 + $0x150] sm:$0xff]
  %v538 = vld [vmem:[%s1 + $0x158] sm:$0xff]
  %v539 = vld [vmem:[%s1 + $0x160] sm:$0xff]
  %v540 = vld [vmem:[%s1 + $0x168] sm:$0xff]
  %v541 = vld [vmem:[%s1 + $0x170] sm:$0xff]
  %v542 = vld [vmem:[%s1 + $0x178] sm:$0xff]
  %v543 = vld [vmem:[%s1 + $0x180] sm:$0xff]
  %v544 = vld [vmem:[%s1 + $0x188] sm:$0xff]
  %545 = vmatprep.subr.mxu0 0.0
  %546 = vmatpush1.msra.mxu0 %v544
  %547 = vmatprep.subr.mxu0 0.0
  %548 = vmatpush1.msra.mxu0 %v543
  %549 = vmatprep.subr.mxu0 0.0
  %550 = vmatpush1.msra.mxu0 %v542
  %551 = vmatprep.subr.mxu0 0.0
  %552 = vmatpush1.msra.mxu0 %v541
  %553 = vmatprep.subr.mxu0 0.0
  %554 = vmatpush1.msra.mxu0 %v540
  %555 = vmatprep.subr.mxu0 0.0
  %556 = vmatpush1.msra.mxu0 %v539
  %557 = vmatprep.subr.mxu0 0.0
  %558 = vmatpush1.msra.mxu0 %v538
  %559 = vmatprep.subr.mxu0 0.0
  %560 = vmatpush1.msra.mxu0 %v537
  %561 = vmatprep.subr.mxu0 0.0
  %562 = vmatpush1.msra.mxu0 %v536
  %563 = vmatprep.subr.mxu0 0.0
  %564 = vmatpush1.msra.mxu0 %v535
  %565 = vmatprep.subr.mxu0 0.0
  %566 = vmatpush1.msra.mxu0 %v534
  %567 = vmatprep.subr.mxu0 0.0
  %568 = vmatpush1.msra.mxu0 %v533
  %569 = vmatprep.subr.mxu0 0.0
  %570 = vmatpush1.msra.mxu0 %v532
  %571 = vmatprep.subr.mxu0 0.0
  %572 = vmatpush1.msra.mxu0 %v531
  %573 = vmatprep.subr.mxu0 0.0
  %574 = vmatpush1.msra.mxu0 %v530
  %575 = vmatprep.subr.mxu0 0.0
  %576 = vmatpush1.msra.mxu0 %v529
  %577 = vmatprep.subr.mxu0 0.0
  %578 = vmatpush2.msra.mxu0 0.0
  %579 = vmatprep.subr.mxu0 0.0
  %580 = vmatpush2.msra.mxu0 0.0
  %581 = vmatprep.subr.mxu0 0.0
  %582 = vmatpush2.msra.mxu0 0.0
  %583 = vmatprep.subr.mxu0 0.0
  %584 = vmatpush2.msra.mxu0 0.0
  %585 = vmatprep.subr.mxu0 0.0
  %586 = vmatpush2.msra.mxu0 0.0
  %587 = vmatprep.subr.mxu0 0.0
  %588 = vmatpush2.msra.mxu0 0.0
  %589 = vmatprep.subr.mxu0 0.0
  %590 = vmatpush2.msra.mxu0 0.0
  %591 = vmatprep.subr.mxu0 0.0
  %592 = vmatpush2.msra.mxu0 0.0
  %593 = vmatprep.subr.mxu0 0.0
  %594 = vmatpush2.msra.mxu0 0.0
  %595 = vmatprep.subr.mxu0 0.0
  %596 = vmatpush2.msra.mxu0 0.0
  %597 = vmatprep.subr.mxu0 0.0
  %598 = vmatpush2.msra.mxu0 0.0
  %599 = vmatprep.subr.mxu0 0.0
  %600 = vmatpush2.msra.mxu0 0.0
  %601 = vmatprep.subr.mxu0 0.0
  %602 = vmatpush2.msra.mxu0 0.0
  %603 = vmatprep.subr.mxu0 0.0
  %604 = vmatpush2.msra.mxu0 0.0
  %605 = vmatprep.subr.mxu0 0.0
  %606 = vmatpush2.msra.mxu0 0.0
  %607 = vmatprep.subr.mxu0 0.0
  %608 = vmatpush2.msra.mxu0 0.0
  %609 = vmatprep.mubr.f32.mxu0 0.0
  %610 = vmatmul.mubr.f32.gmra.mxu0 %v526
  %v611 = vpop.f32.mrf.mxu0
  %v612 = vadd.f32 0.0, %v611
  %v613 = vpop.f32.mrf.mxu0
  %614 = vmatprep.mubr.f32.mxu0 0.0
  %615 = vmatmul.mubr.f32.gmra.mxu0 %v528
  %v616 = vpop.f32.mrf.mxu0
  %v617 = vadd.f32 0.0, %v616
  %v618 = vpop.f32.mrf.mxu0
  %619 = vdwg.mxu0
  %v620 = vrcp.pop %v612
  %v621 = vrcp.pop %v617
  %v622 = vmul.f32 %v526, %v620
  %v623 = vmul.f32 %v528, %v621
  %624 = vmatprep.subr.mxu0 0.0
  %625 = vmatpush1.msra.mxu0 %v441
  %626 = vmatprep.subr.mxu0 0.0
  %627 = vmatpush1.msra.mxu0 %v440
  %628 = vmatprep.subr.mxu0 0.0
  %629 = vmatpush1.msra.mxu0 %v439
  %630 = vmatprep.subr.mxu0 0.0
  %631 = vmatpush1.msra.mxu0 %v438
  %632 = vmatprep.subr.mxu0 0.0
  %633 = vmatpush1.msra.mxu0 %v437
  %634 = vmatprep.subr.mxu0 0.0
  %635 = vmatpush1.msra.mxu0 %v436
  %636 = vmatprep.subr.mxu0 0.0
  %637 = vmatpush1.msra.mxu0 %v435
  %638 = vmatprep.subr.mxu0 0.0
  %639 = vmatpush1.msra.mxu0 %v434
  %640 = vmatprep.subr.mxu0 0.0
  %641 = vmatpush1.msra.mxu0 %v433
  %642 = vmatprep.subr.mxu0 0.0
  %643 = vmatpush1.msra.mxu0 %v432
  %644 = vmatprep.subr.mxu0 0.0
  %645 = vmatpush1.msra.mxu0 %v431
  %646 = vmatprep.subr.mxu0 0.0
  %647 = vmatpush1.msra.mxu0 %v430
  %648 = vmatprep.subr.mxu0 0.0
  %649 = vmatpush1.msra.mxu0 %v429
  %650 = vmatprep.subr.mxu0 0.0
  %651 = vmatpush1.msra.mxu0 %v428
  %652 = vmatprep.subr.mxu0 0.0
  %653 = vmatpush1.msra.mxu0 %v427
  %654 = vmatprep.subr.mxu0 0.0
  %655 = vmatpush1.msra.mxu0 %v426
  %656 = vmatprep.subr.mxu0 0.0
  %657 = vmatpush2.msra.mxu0 0.0
  %658 = vmatprep.subr.mxu0 0.0
  %659 = vmatpush2.msra.mxu0 0.0
  %660 = vmatprep.subr.mxu0 0.0
  %661 = vmatpush2.msra.mxu0 0.0
  %662 = vmatprep.subr.mxu0 0.0
  %663 = vmatpush2.msra.mxu0 0.0
  %664 = vmatprep.subr.mxu0 0.0
  %665 = vmatpush2.msra.mxu0 0.0
  %666 = vmatprep.subr.mxu0 0.0
  %667 = vmatpush2.msra.mxu0 0.0
  %668 = vmatprep.subr.mxu0 0.0
  %669 = vmatpush2.msra.mxu0 0.0
  %670 = vmatprep.subr.mxu0 0.0
  %671 = vmatpush2.msra.mxu0 0.0
  %672 = vmatprep.subr.mxu0 0.0
  %673 = vmatpush2.msra.mxu0 0.0
  %674 = vmatprep.subr.mxu0 0.0
  %675 = vmatpush2.msra.mxu0 0.0
  %676 = vmatprep.subr.mxu0 0.0
  %677 = vmatpush2.msra.mxu0 0.0
  %678 = vmatprep.subr.mxu0 0.0
  %679 = vmatpush2.msra.mxu0 0.0
  %680 = vmatprep.subr.mxu0 0.0
  %681 = vmatpush2.msra.mxu0 0.0
  %682 = vmatprep.subr.mxu0 0.0
  %683 = vmatpush2.msra.mxu0 0.0
  %684 = vmatprep.subr.mxu0 0.0
  %685 = vmatpush2.msra.mxu0 0.0
  %686 = vmatprep.subr.mxu0 0.0
  %687 = vmatpush2.msra.mxu0 0.0
  %688 = vmatprep.mubr.f32.mxu0 0.0
  %689 = vmatmul.mubr.f32.gmra.mxu0 %v622
  %v690 = vpop.f32.mrf.mxu0
  %v691 = vadd.f32 0.0, %v690
  %v692 = vpop.f32.mrf.mxu0
  %693 = vmatprep.mubr.f32.mxu0 0.0
  %694 = vmatmul.mubr.f32.gmra.mxu0 %v623
  %v695 = vpop.f32.mrf.mxu0
  %v696 = vadd.f32 0.0, %v695
  %v697 = vpop.f32.mrf.mxu0
  %698 = vdwg.mxu0
  %v699 = vld [vmem:[%s1 + $0x190] sm:$0x3]
  %vm700 = vcmask 130048
  %v702 = vsel %vm700, %v699, 0
  %704 = vmatprep.subr.mxu0 0.0
  %705 = vmatpush1.msra.mxu0 0.0
  %706 = vmatprep.subr.mxu0 0.0
  %707 = vmatpush1.msra.mxu0 0.0
  %708 = vmatprep.subr.mxu0 0.0
  %709 = vmatpush1.msra.mxu0 0.0
  %710 = vmatprep.subr.mxu0 0.0
  %711 = vmatpush1.msra.mxu0 0.0
  %712 = vmatprep.subr.mxu0 0.0
  %713 = vmatpush1.msra.mxu0 0.0
  %714 = vmatprep.subr.mxu0 0.0
  %715 = vmatpush1.msra.mxu0 0.0
  %716 = vmatprep.subr.mxu0 0.0
  %717 = vmatpush1.msra.mxu0 0.0
  %718 = vmatprep.subr.mxu0 0.0
  %719 = vmatpush1.msra.mxu0 0.0
  %720 = vmatprep.subr.mxu0 0.0
  %721 = vmatpush1.msra.mxu0 0.0
  %722 = vmatprep.subr.mxu0 0.0
  %723 = vmatpush1.msra.mxu0 0.0
  %724 = vmatprep.subr.mxu0 0.0
  %725 = vmatpush1.msra.mxu0 0.0
  %726 = vmatprep.subr.mxu0 0.0
  %727 = vmatpush1.msra.mxu0 0.0
  %728 = vmatprep.subr.mxu0 0.0
  %729 = vmatpush1.msra.mxu0 0.0
  %730 = vmatprep.subr.mxu0 0.0
  %731 = vmatpush1.msra.mxu0 0.0
  %732 = vmatprep.subr.mxu0 0.0
  %733 = vmatpush1.msra.mxu0 %v696
  %734 = vmatprep.subr.mxu0 0.0
  %735 = vmatpush1.msra.mxu0 %v691
  %736 = vmatprep.subr.mxu0 0.0
  %737 = vmatpush2.msra.mxu0 0.0
  %738 = vmatprep.subr.mxu0 0.0
  %739 = vmatpush2.msra.mxu0 0.0
  %740 = vmatprep.subr.mxu0 0.0
  %741 = vmatpush2.msra.mxu0 0.0
  %742 = vmatprep.subr.mxu0 0.0
  %743 = vmatpush2.msra.mxu0 0.0
  %744 = vmatprep.subr.mxu0 0.0
  %745 = vmatpush2.msra.mxu0 0.0
  %746 = vmatprep.subr.mxu0 0.0
  %747 = vmatpush2.msra.mxu0 0.0
  %748 = vmatprep.subr.mxu0 0.0
  %749 = vmatpush2.msra.mxu0 0.0
  %750 = vmatprep.subr.mxu0 0.0
  %751 = vmatpush2.msra.mxu0 0.0
  %752 = vmatprep.subr.mxu0 0.0
  %753 = vmatpush2.msra.mxu0 0.0
  %754 = vmatprep.subr.mxu0 0.0
  %755 = vmatpush2.msra.mxu0 0.0
  %756 = vmatprep.subr.mxu0 0.0
  %757 = vmatpush2.msra.mxu0 0.0
  %758 = vmatprep.subr.mxu0 0.0
  %759 = vmatpush2.msra.mxu0 0.0
  %760 = vmatprep.subr.mxu0 0.0
  %761 = vmatpush2.msra.mxu0 0.0
  %762 = vmatprep.subr.mxu0 0.0
  %763 = vmatpush2.msra.mxu0 0.0
  %764 = vmatprep.subr.mxu0 0.0
  %765 = vmatpush2.msra.mxu0 0.0
  %766 = vmatprep.subr.mxu0 0.0
  %767 = vmatpush2.msra.mxu0 0.0
  %768 = vmatprep.mubr.f32.mxu0 0.0
  %769 = vmatmul.mubr.f32.gmra.mxu0 %v702
  %v770 = vpop.f32.mrf.mxu0
  %v771 = vadd.f32 0.0, %v770
  %v772 = vpop.f32.mrf.mxu0
  %773 = vdwg.mxu0
  %v774 = vld [vmem:[%s1 + $0x198] sm:$0xff]
  %v775 = vld [vmem:[%s1 + $0x1a0] sm:$0xff]
  %v776 = vld [vmem:[%s1 + $0x1a8] sm:$0xff]
  %v777 = vld [vmem:[%s1 + $0x1b0] sm:$0xff]
  %v778 = vld [vmem:[%s1 + $0x1b8] sm:$0xff]
  %v779 = vld [vmem:[%s1 + $0x1c0] sm:$0xff]
  %v780 = vld [vmem:[%s1 + $0x1c8] sm:$0xff]
  %v781 = vld [vmem:[%s1 + $0x1d0] sm:$0xff]
  %v782 = vld [vmem:[%s1 + $0x1d8] sm:$0xff]
  %v783 = vld [vmem:[%s1 + $0x1e0] sm:$0xff]
  %v784 = vld [vmem:[%s1 + $0x1e8] sm:$0xff]
  %v785 = vld [vmem:[%s1 + $0x1f0] sm:$0xff]
  %v786 = vld [vmem:[%s1 + $0x1f8] sm:$0xff]
  %v787 = vld [vmem:[%s1 + $0x200] sm:$0xff]
  %v788 = vld [vmem:[%s1 + $0x208] sm:$0xff]
  %v789 = vld [vmem:[%s1 + $0x210] sm:$0xff]
  %v790 = vld [vmem:[%s1 + $0x218] sm:$0x1]
  %v791 = vlaneseq
  %v792 = vshrl.u32 %v791, 7
  %v793 = vsub.s32 0, %v792
  %v794 = vrot.slane %v790, %v793
  %795 = vmatprep.subr.mxu0 0.0
  %796 = vmatpush1.msra.mxu0 %v789
  %797 = vmatprep.subr.mxu0 0.0
  %798 = vmatpush1.msra.mxu0 %v788
  %799 = vmatprep.subr.mxu0 0.0
  %800 = vmatpush1.msra.mxu0 %v787
  %801 = vmatprep.subr.mxu0 0.0
  %802 = vmatpush1.msra.mxu0 %v786
  %803 = vmatprep.subr.mxu0 0.0
  %804 = vmatpush1.msra.mxu0 %v785
  %805 = vmatprep.subr.mxu0 0.0
  %806 = vmatpush1.msra.mxu0 %v784
  %807 = vmatprep.subr.mxu0 0.0
  %808 = vmatpush1.msra.mxu0 %v783
  %809 = vmatprep.subr.mxu0 0.0
  %810 = vmatpush1.msra.mxu0 %v782
  %811 = vmatprep.subr.mxu0 0.0
  %812 = vmatpush1.msra.mxu0 %v781
  %813 = vmatprep.subr.mxu0 0.0
  %814 = vmatpush1.msra.mxu0 %v780
  %815 = vmatprep.subr.mxu0 0.0
  %816 = vmatpush1.msra.mxu0 %v779
  %817 = vmatprep.subr.mxu0 0.0
  %818 = vmatpush1.msra.mxu0 %v778
  %819 = vmatprep.subr.mxu0 0.0
  %820 = vmatpush1.msra.mxu0 %v777
  %821 = vmatprep.subr.mxu0 0.0
  %822 = vmatpush1.msra.mxu0 %v776
  %823 = vmatprep.subr.mxu0 0.0
  %824 = vmatpush1.msra.mxu0 %v775
  %825 = vmatprep.subr.mxu0 0.0
  %826 = vmatpush1.msra.mxu0 %v774
  %827 = vmatprep.subr.mxu0 0.0
  %828 = vmatpush2.msra.mxu0 0.0
  %829 = vmatprep.subr.mxu0 0.0
  %830 = vmatpush2.msra.mxu0 0.0
  %831 = vmatprep.subr.mxu0 0.0
  %832 = vmatpush2.msra.mxu0 0.0
  %833 = vmatprep.subr.mxu0 0.0
  %834 = vmatpush2.msra.mxu0 0.0
  %835 = vmatprep.subr.mxu0 0.0
  %836 = vmatpush2.msra.mxu0 0.0
  %837 = vmatprep.subr.mxu0 0.0
  %838 = vmatpush2.msra.mxu0 0.0
  %839 = vmatprep.subr.mxu0 0.0
  %840 = vmatpush2.msra.mxu0 0.0
  %841 = vmatprep.subr.mxu0 0.0
  %842 = vmatpush2.msra.mxu0 0.0
  %843 = vmatprep.subr.mxu0 0.0
  %844 = vmatpush2.msra.mxu0 0.0
  %845 = vmatprep.subr.mxu0 0.0
  %846 = vmatpush2.msra.mxu0 0.0
  %847 = vmatprep.subr.mxu0 0.0
  %848 = vmatpush2.msra.mxu0 0.0
  %849 = vmatprep.subr.mxu0 0.0
  %850 = vmatpush2.msra.mxu0 0.0
  %851 = vmatprep.subr.mxu0 0.0
  %852 = vmatpush2.msra.mxu0 0.0
  %853 = vmatprep.subr.mxu0 0.0
  %854 = vmatpush2.msra.mxu0 0.0
  %855 = vmatprep.subr.mxu0 0.0
  %856 = vmatpush2.msra.mxu0 0.0
  %857 = vmatprep.subr.mxu0 0.0
  %858 = vmatpush2.msra.mxu0 0.0
  %859 = vmatprep.mubr.f32.mxu0 0.0
  %860 = vmatmul.mubr.f32.gmra.mxu0 %v771
  %v861 = vpop.f32.mrf.mxu0
  %v862 = vadd.f32 %v794, %v861
  %v863 = vpop.f32.mrf.mxu0
  %864 = vdwg.mxu0
  %865 = vst [vmem:[%s2] sm:$0x3] %v862
  // Predicated region
  $region10: #{attention_mlp_forward.1} parent=0 // pred_check
    _
  $region11: #{attention_mlp_forward.1} parent=0 // pred_check_branch
    %867 = sbr.rel (0) target = $region13
  $region12: #{attention_mlp_forward.1} parent=0 // pred_region
    _
  $region13: #{attention_mlp_forward.1} parent=0 // pred_fallthru
    _
  // Predicated region
  $region14: #{attention_mlp_forward.1} parent=0 // pred_check
    _
  $region15: #{attention_mlp_forward.1} parent=0 // pred_check_branch
    %869 = sbr.rel (0) target = $region17
  $region16: #{attention_mlp_forward.1} parent=0 // pred_region
    _
  $region17: #{attention_mlp_forward.1} parent=0 // pred_fallthru
    _

</llo_original>
